<compile_context>
chip_gen: v5e
topology: v5e:2x2
jax: 0.10.0
libtpu: 0.0.40
codegen_flags: <defaults>
</compile_context>

<pallas_src>
import math

import jax
import jax.numpy as jnp
from jax.experimental import pallas as pl
from jax.experimental.pallas import tpu as pltpu


def _round_up(x, m):
    return ((x + m - 1) // m) * m


def _lstm_cell_kernel(w_ref, lhs_ref, c_ref, out_ref):
    """Single-step LSTM cell for a block of Bb batch elements.

    w_ref   : (Bb, Rpad, 4H) bf16   rows = [W_ih^T | W_hh^T | bias_ih+bias_hh | 0 pad]
    lhs_ref : (Bb, 1,  Rpad) bf16   lanes = [x | h_prev | 1 | 0 pad]
    c_ref   : (Bb, 1,  H)    f32    previous cell state
    out_ref : (Bb, 8,  Hpad) f32    rows 0..5 = [h, c, o, i, f, g] in lanes [0:H]
    """
    H = c_ref.shape[-1]

    # One fused contraction on the MXU (f32 accumulation):
    #   gates = x @ W_ih^T + h_prev @ W_hh^T + (bias_ih + bias_hh)
    gates = jnp.einsum(
        "bkr,brg->bkg", lhs_ref[...], w_ref[...],
        preferred_element_type=jnp.float32,
    )  # (Bb, 1, 4H), gate order: i | f | o | g

    # Single transcendental pass on the EUP: tanh everywhere, with
    # sigmoid(x) = 0.5 * (tanh(x/2) + 1) recovered for the i/f/o lanes.
    lane = jax.lax.broadcasted_iota(jnp.int32, gates.shape, 2)
    is_sig = lane < 3 * H
    t = jnp.tanh(jnp.where(is_sig, 0.5 * gates, gates))
    act = jnp.where(is_sig, 0.5 * (t + 1.0), t)

    i_g = act[..., 0:H]
    f_g = act[..., H:2 * H]
    o_g = act[..., 2 * H:3 * H]
    g_g = act[..., 3 * H:4 * H]

    cprev = c_ref[...]
    c = f_g * cprev + i_g * g_g
    h = o_g * jnp.maximum(c, 0.0)          # h = o * relu(c), as in the module

    # Row-packed output: one sublane row per quantity, simple slice stores
    # (no cross-lane concatenate / XLU shuffles).
    out_ref[...] = jnp.zeros_like(out_ref)
    out_ref[:, 0:1, 0:H] = h
    out_ref[:, 1:2, 0:H] = c
    out_ref[:, 2:3, 0:H] = o_g
    out_ref[:, 3:4, 0:H] = i_g
    out_ref[:, 4:5, 0:H] = f_g
    out_ref[:, 5:6, 0:H] = g_g


def prepare_lstm_params(weight_ih, weight_hh, bias_ih, bias_hh,
                        param_dtype=jnp.bfloat16):
    """One-time parameter prep (call once, reuse across forwards).

    weight_ih: (B, 4H, I), weight_hh: (B, 4H, H), biases: (B, 4H).
    Returns a single fused, lane-dense slab of shape (B, Rpad, 4H) in
    `param_dtype` whose rows are [W_ih^T | W_hh^T | bias_ih+bias_hh | 0 pad],
    Rpad = round_up(I + H + 1, 8).
    """
    B, G, I = weight_ih.shape
    H = weight_hh.shape[-1]
    R = I + H + 1
    Rpad = _round_up(R, 8)
    wih_t = jnp.transpose(weight_ih, (0, 2, 1))        # (B, I, 4H)
    whh_t = jnp.transpose(weight_hh, (0, 2, 1))        # (B, H, 4H)
    bias = (bias_ih + bias_hh).reshape(B, 1, G)        # fused bias row
    parts = [wih_t, whh_t, bias]
    if Rpad > R:
        parts.append(jnp.zeros((B, Rpad - R, G), wih_t.dtype))
    return jnp.concatenate(parts, axis=1).astype(param_dtype)


def _pick_block_batch(B, Rpad, G, H, Hpad, w_itemsize,
                      vmem_budget_bytes=32 << 20):
    """Largest divisor of B whose double-buffered working set fits the budget."""
    per_elem = 2 * Rpad * G * w_itemsize       # fused weight slab (x2 pipeline bufs)
    per_elem += 2 * Rpad * w_itemsize          # [x | h | 1] row
    per_elem += 2 * H * 4                      # c_prev (f32)
    per_elem += 2 * 8 * Hpad * 4               # row-packed output (f32)
    bb_max = min(B, max(1, vmem_budget_bytes // max(per_elem, 1)))
    for cand in range(bb_max, 0, -1):
        if B % cand == 0:
            return cand, per_elem
    return 1, per_elem


@jax.jit
def lstm_module_forward(w, input_, hx=None):
    """Mirrors LstmModule.forward using the fused slab from prepare_lstm_params.

    w: (B, Rpad, 4H) param_dtype slab.  input_: (B, I, 1).
    Returns ((h, c), o, i, f, g, cprev), each of shape (B, H) float32.
    """
    B, Rpad, G = w.shape
    H = G // 4
    I = input_.shape[1]
    assert Rpad >= I + H + 1

    if hx is None:
        h0 = jnp.zeros((B, H), jnp.float32)
        c0 = jnp.zeros((B, H), jnp.float32)
    else:
        h0, c0 = hx
        h0 = h0.reshape(B, H).astype(jnp.float32)
        c0 = c0.reshape(B, H).astype(jnp.float32)

    # LHS row [x | h_prev | 1 | 0 pad], cast to the weight dtype so the single
    # fused einsum runs a native-dtype MXU pass (f32 accumulation in-kernel).
    parts = [input_.reshape(B, 1, I).astype(jnp.float32),
             h0.reshape(B, 1, H),
             jnp.ones((B, 1, 1), jnp.float32)]
    if Rpad > I + H + 1:
        parts.append(jnp.zeros((B, 1, Rpad - (I + H + 1)), jnp.float32))
    lhs = jnp.concatenate(parts, axis=-1).astype(w.dtype)
    c3 = c0.reshape(B, 1, H)

    Hpad = _round_up(H, 128)
    Bb, per_elem = _pick_block_batch(B, Rpad, G, H, Hpad, w.dtype.itemsize)
    grid = (B // Bb,)

    # Explicit scoped-VMEM limit derived from the actual block working set
    # (2x headroom), clamped below every generation's physical VMEM.
    vmem_limit = int(min(64 << 20, max(16 << 20, 2 * Bb * per_elem)))

    grid_spec = pltpu.PrefetchScalarGridSpec(
        num_scalar_prefetch=0,
        grid=grid,
        in_specs=[
            pl.BlockSpec((Bb, Rpad, G), lambda b: (b, 0, 0)),   # fused weights+bias
            pl.BlockSpec((Bb, 1, Rpad), lambda b: (b, 0, 0)),   # [x | h_prev | 1]
            pl.BlockSpec((Bb, 1, H), lambda b: (b, 0, 0)),      # c_prev
        ],
        out_specs=pl.BlockSpec((Bb, 8, Hpad), lambda b: (b, 0, 0)),
    )

    packed = pl.pallas_call(
        _lstm_cell_kernel,
        out_shape=jax.ShapeDtypeStruct((B, 8, Hpad), jnp.float32),
        grid_spec=grid_spec,
        compiler_params=pltpu.CompilerParams(
            dimension_semantics=("parallel",),
            vmem_limit_bytes=vmem_limit,
        ),
    )(w, lhs, c3)

    h = packed[:, 0, :H]
    c = packed[:, 1, :H]
    o = packed[:, 2, :H]
    i = packed[:, 3, :H]
    f = packed[:, 4, :H]
    g = packed[:, 5, :H]
    # cprev is the (unmodified) input cell state — returned directly.
    return (h, c), o, i, f, g, c0


def _reference_forward(weight_ih, weight_hh, bias_ih, bias_hh, input_, hx=None,
                       quant_dtype=None):
    """Pure-JAX transcription of the PyTorch forward (optionally applying the
    same bf16 parameter/LHS rounding the kernel uses) for correctness checks."""
    B, G, I = weight_ih.shape
    H = G // 4
    if hx is None:
        h0 = jnp.zeros((B, H), jnp.float32)
        c0 = jnp.zeros((B, H), jnp.float32)
    else:
        h0, c0 = hx

    def q(a):
        if quant_dtype is None:
            return a
        return a.astype(quant_dtype).astype(jnp.float32)

    wih = q(weight_ih)
    whh = q(weight_hh)
    bias = q(bias_ih + bias_hh)
    xq = q(input_)
    hq = q(h0).reshape(B, H, 1)

    w_x = jnp.matmul(wih, xq).reshape(B, -1)
    w_h = jnp.matmul(whh, hq).reshape(B, -1)
    w_w = (w_x + w_h + bias).T
    i = jax.nn.sigmoid(w_w[0:H]).T
    f = jax.nn.sigmoid(w_w[H:2 * H]).T
    o = jax.nn.sigmoid(w_w[2 * H:3 * H]).T
    g = jnp.tanh(w_w[3 * H:4 * H]).T
    c = f * c0 + i * g
    h = o * jax.nn.relu(c)
    return (h, c), o, i, f, g, c0


if __name__ == "__main__":
    # Small shapes consistent with the module.
    batch_size = 2
    input_units = 16
    hidden_units = 32
    num_chunks = 4
    G = num_chunks * hidden_units

    stdv = 1.0 / math.sqrt(hidden_units)
    key = jax.random.PRNGKey(0)
    k_wih, k_whh, k_bih, k_bhh, k_x = jax.random.split(key, 5)

    weight_ih = jax.random.uniform(k_wih, (batch_size, G, input_units),
                                   jnp.float32, -stdv, stdv)
    weight_hh = jax.random.uniform(k_whh, (batch_size, G, hidden_units),
                                   jnp.float32, -stdv, stdv)
    bias_ih = jax.random.uniform(k_bih, (batch_size, G), jnp.float32, -stdv, stdv)
    bias_hh = jax.random.uniform(k_bhh, (batch_size, G), jnp.float32, -stdv, stdv)

    # input_ shaped (B, I, 1) so torch.matmul(weight_ih, input_) semantics hold.
    x = jax.random.normal(k_x, (batch_size, input_units, 1), jnp.float32)

    # One-time layout/dtype prep (hoisted out of the per-call path).
    w = prepare_lstm_params(weight_ih, weight_hh, bias_ih, bias_hh)
    w = jax.block_until_ready(w)

    out = lstm_module_forward(w, x)
    out = jax.block_until_ready(out)

    # Reference with the same bf16 parameter rounding (tight tolerance) and the
    # original f32 reference (loose tolerance bounding the bf16 weight error).
    ref_q = _reference_forward(weight_ih, weight_hh, bias_ih, bias_hh, x,
                               quant_dtype=jnp.bfloat16)
    ref_f = _reference_forward(weight_ih, weight_hh, bias_ih, bias_hh, x)

    (h, c), o, i, f, g, cprev = out
    (hq, cq), oq, iq, fq, gq, cpq = ref_q
    (hf, cf), of, i_f, ff, gf, cpf = ref_f

    for a, b in zip((h, c, o, i, f, g, cprev), (hq, cq, oq, iq, fq, gq, cpq)):
        assert a.shape == b.shape, (a.shape, b.shape)
        assert jnp.allclose(a, b, atol=2e-3, rtol=2e-3)
    for a, b in zip((h, c, o, i, f, g, cprev), (hf, cf, of, i_f, ff, gf, cpf)):
        assert jnp.allclose(a, b, atol=2e-2, rtol=2e-2)

    print("KERNEL_OK")
</pallas_src>

<mosaic_0001>
module attributes {stable_mosaic.version = 11 : i64} {
  func.func @_lstm_cell_kernel(%arg0: i32, %arg1: memref<2x56x128xbf16, #tpu.memory_space<vmem>>, %arg2: memref<2x1x56xbf16, #tpu.memory_space<vmem>>, %arg3: memref<2x1x32xf32, #tpu.memory_space<vmem>>, %arg4: memref<2x8x128xf32, #tpu.memory_space<vmem>>) attributes {dimension_semantics = [#tpu.dimension_semantics<parallel>], iteration_bounds = array<i64: 1>, scalar_prefetch = 0 : i64, scratch_operands = 0 : i64, tpu.core_type = #tpu.core_type<tc>, window_params = [{transform_indices = @transform_0, window_bounds = array<i64: 2, 56, 128>}, {transform_indices = @transform_1, window_bounds = array<i64: 2, 1, 56>}, {transform_indices = @transform_2, window_bounds = array<i64: 2, 1, 32>}, {transform_indices = @transform_3, window_bounds = array<i64: 2, 8, 128>}]} {
    %c0 = arith.constant 0 : index
    %c0_0 = arith.constant 0 : index
    %c0_1 = arith.constant 0 : index
    %0 = vector.load %arg2[%c0, %c0_0, %c0_1] : memref<2x1x56xbf16, #tpu.memory_space<vmem>>, vector<2x1x56xbf16>
    %c0_2 = arith.constant 0 : index
    %c0_3 = arith.constant 0 : index
    %c0_4 = arith.constant 0 : index
    %1 = vector.load %arg1[%c0_2, %c0_3, %c0_4] : memref<2x56x128xbf16, #tpu.memory_space<vmem>>, vector<2x56x128xbf16>
    "tpu.trace_start"() <{level = 10 : i32, message = "bkr,brg->bkg"}> : () -> ()
    %cst = arith.constant dense<0.000000e+00> : vector<2x1x128xf32>
    %2 = tpu.matmul %0, %1, %cst {dimension_numbers = #tpu.dot_dimension_numbers<[2], [1], [1], [2], [0, 0, 0, 1, 1, 2], [0], [0]>} : vector<2x1x56xbf16>, vector<2x56x128xbf16>, vector<2x1x128xf32> -> vector<2x1x128xf32>
    "tpu.trace_stop"() : () -> ()
    %3 = tpu.iota {dimensions = array<i32: 2>} : vector<2x1x128xi32>
    %c96_i32 = arith.constant 96 : i32
    %4 = vector.broadcast %c96_i32 : i32 to vector<2x1x128xi32>
    %5 = arith.cmpi slt, %3, %4 : vector<2x1x128xi32>
    %cst_5 = arith.constant 5.000000e-01 : f32
    %6 = vector.broadcast %cst_5 : f32 to vector<2x1x128xf32>
    %7 = arith.mulf %6, %2 : vector<2x1x128xf32>
    %8 = arith.select %5, %7, %2 : vector<2x1x128xi1>, vector<2x1x128xf32>
    %9 = math.tanh %8 : vector<2x1x128xf32>
    %cst_6 = arith.constant 1.000000e+00 : f32
    %10 = vector.broadcast %cst_6 : f32 to vector<2x1x128xf32>
    %11 = arith.addf %9, %10 : vector<2x1x128xf32>
    %cst_7 = arith.constant 5.000000e-01 : f32
    %12 = vector.broadcast %cst_7 : f32 to vector<2x1x128xf32>
    %13 = arith.mulf %12, %11 : vector<2x1x128xf32>
    %14 = arith.select %5, %13, %9 : vector<2x1x128xi1>, vector<2x1x128xf32>
    %15 = vector.extract_strided_slice %14 {offsets = [0, 0, 0], sizes = [2, 1, 32], strides = [1, 1, 1]} : vector<2x1x128xf32> to vector<2x1x32xf32>
    %16 = vector.extract_strided_slice %14 {offsets = [0, 0, 32], sizes = [2, 1, 32], strides = [1, 1, 1]} : vector<2x1x128xf32> to vector<2x1x32xf32>
    %17 = vector.extract_strided_slice %14 {offsets = [0, 0, 64], sizes = [2, 1, 32], strides = [1, 1, 1]} : vector<2x1x128xf32> to vector<2x1x32xf32>
    %18 = vector.extract_strided_slice %14 {offsets = [0, 0, 96], sizes = [2, 1, 32], strides = [1, 1, 1]} : vector<2x1x128xf32> to vector<2x1x32xf32>
    %c0_8 = arith.constant 0 : index
    %c0_9 = arith.constant 0 : index
    %c0_10 = arith.constant 0 : index
    %19 = vector.load %arg3[%c0_8, %c0_9, %c0_10] : memref<2x1x32xf32, #tpu.memory_space<vmem>>, vector<2x1x32xf32>
    %20 = arith.mulf %16, %19 : vector<2x1x32xf32>
    %21 = arith.mulf %15, %18 : vector<2x1x32xf32>
    %22 = arith.addf %20, %21 : vector<2x1x32xf32>
    %cst_11 = arith.constant 0.000000e+00 : f32
    %23 = vector.broadcast %cst_11 : f32 to vector<2x1x32xf32>
    %24 = arith.maximumf %22, %23 : vector<2x1x32xf32>
    %25 = arith.mulf %17, %24 : vector<2x1x32xf32>
    %cst_12 = arith.constant 0.000000e+00 : f32
    %26 = vector.broadcast %cst_12 : f32 to vector<2x8x128xf32>
    %c0_13 = arith.constant 0 : index
    %c0_14 = arith.constant 0 : index
    %c0_15 = arith.constant 0 : index
    %27 = vector.load %arg4[%c0_13, %c0_14, %c0_15] : memref<2x8x128xf32, #tpu.memory_space<vmem>>, vector<2x8x128xf32>
    tpu.vector_store %arg4[%c0_13, %c0_14, %c0_15], %26 {strides = array<i32>} : memref<2x8x128xf32, #tpu.memory_space<vmem>>, vector<2x8x128xf32>,
    %c0_16 = arith.constant 0 : index
    %c0_17 = arith.constant 0 : index
    %c0_18 = arith.constant 0 : index
    %28 = vector.load %arg4[%c0_16, %c0_17, %c0_18] : memref<2x8x128xf32, #tpu.memory_space<vmem>>, vector<2x1x32xf32>
    tpu.vector_store %arg4[%c0_16, %c0_17, %c0_18], %25 {strides = array<i32>} : memref<2x8x128xf32, #tpu.memory_space<vmem>>, vector<2x1x32xf32>,
    %c0_19 = arith.constant 0 : index
    %c1 = arith.constant 1 : index
    %c0_20 = arith.constant 0 : index
    %29 = vector.load %arg4[%c0_19, %c1, %c0_20] : memref<2x8x128xf32, #tpu.memory_space<vmem>>, vector<2x1x32xf32>
    tpu.vector_store %arg4[%c0_19, %c1, %c0_20], %22 {strides = array<i32>} : memref<2x8x128xf32, #tpu.memory_space<vmem>>, vector<2x1x32xf32>,
    %c0_21 = arith.constant 0 : index
    %c2 = arith.constant 2 : index
    %c0_22 = arith.constant 0 : index
    %30 = vector.load %arg4[%c0_21, %c2, %c0_22] : memref<2x8x128xf32, #tpu.memory_space<vmem>>, vector<2x1x32xf32>
    tpu.vector_store %arg4[%c0_21, %c2, %c0_22], %17 {strides = array<i32>} : memref<2x8x128xf32, #tpu.memory_space<vmem>>, vector<2x1x32xf32>,
    %c0_23 = arith.constant 0 : index
    %c3 = arith.constant 3 : index
    %c0_24 = arith.constant 0 : index
    %31 = vector.load %arg4[%c0_23, %c3, %c0_24] : memref<2x8x128xf32, #tpu.memory_space<vmem>>, vector<2x1x32xf32>
    tpu.vector_store %arg4[%c0_23, %c3, %c0_24], %15 {strides = array<i32>} : memref<2x8x128xf32, #tpu.memory_space<vmem>>, vector<2x1x32xf32>,
    %c0_25 = arith.constant 0 : index
    %c4 = arith.constant 4 : index
    %c0_26 = arith.constant 0 : index
    %32 = vector.load %arg4[%c0_25, %c4, %c0_26] : memref<2x8x128xf32, #tpu.memory_space<vmem>>, vector<2x1x32xf32>
    tpu.vector_store %arg4[%c0_25, %c4, %c0_26], %16 {strides = array<i32>} : memref<2x8x128xf32, #tpu.memory_space<vmem>>, vector<2x1x32xf32>,
    %c0_27 = arith.constant 0 : index
    %c5 = arith.constant 5 : index
    %c0_28 = arith.constant 0 : index
    %33 = vector.load %arg4[%c0_27, %c5, %c0_28] : memref<2x8x128xf32, #tpu.memory_space<vmem>>, vector<2x1x32xf32>
    tpu.vector_store %arg4[%c0_27, %c5, %c0_28], %18 {strides = array<i32>} : memref<2x8x128xf32, #tpu.memory_space<vmem>>, vector<2x1x32xf32>,
    return
  }
  func.func @transform_0(%arg0: i32) -> (i32, i32, i32) {
    %c0_i32 = arith.constant 0 : i32
    %c0_i32_0 = arith.constant 0 : i32
    %c0_i32_1 = arith.constant 0 : i32
    return %arg0, %c0_i32, %c0_i32_0 : i32, i32, i32
  }
  func.func @transform_1(%arg0: i32) -> (i32, i32, i32) {
    %c0_i32 = arith.constant 0 : i32
    %c0_i32_0 = arith.constant 0 : i32
    %c0_i32_1 = arith.constant 0 : i32
    return %arg0, %c0_i32, %c0_i32_0 : i32, i32, i32
  }
  func.func @transform_2(%arg0: i32) -> (i32, i32, i32) {
    %c0_i32 = arith.constant 0 : i32
    %c0_i32_0 = arith.constant 0 : i32
    %c0_i32_1 = arith.constant 0 : i32
    return %arg0, %c0_i32, %c0_i32_0 : i32, i32, i32
  }
  func.func @transform_3(%arg0: i32) -> (i32, i32, i32) {
    %c0_i32 = arith.constant 0 : i32
    %c0_i32_0 = arith.constant 0 : i32
    %c0_i32_1 = arith.constant 0 : i32
    return %arg0, %c0_i32, %c0_i32_0 : i32, i32, i32
  }
}

</mosaic_0001>

<llo_original>
// kernel: lstm_module_forward.1
$region0: #{lstm_module_forward.1}
  #allocation0 [shape = 'u32[]', space=smem, size = 0x4, offset = 0x4, fixed_abs, tag = 'smem constant byte address 0x4 - core index']
  #allocation1 [shape = 'u32[72,128]{1,0:T(1,128)}', space=vmem, size = 0x9000, scoped, tag = 'internal scratch']
  %s0 = inlined_call_operand.hbm [shape: bf16[2,56,128], index: 0, kind: input, shape index: {}]
  %s1 = inlined_call_operand.vmem [shape: bf16[2,1,56], index: 1, kind: input, shape index: {}]
  %s2 = inlined_call_operand.vmem [shape: f32[2,1,32], index: 2, kind: input, shape index: {}]
  %s3 = inlined_call_operand.vmem [shape: f32[2,8,128], index: 3, kind: output, shape index: {}]
  %s4 = sld [smem:[#allocation0]]
  $region26: #{lstm_module_forward.1} parent=0
    _
  %s6 = ssub.s32 1, %s4
  %s7 = scalar_select 0, %s6, %s4
  $region1: #{lstm_module_forward.1} parent=0
    #allocation2 [shape = 'u8[28672]{0}', space=vmem, size = 0x7000, scoped, tag = 'input window, operand 0, single buffered']
    #allocation3 [shape = 's32[1]{0}', space=sflag, size = 0x4, scoped, tag = 'scoped memory for lstm_module_forward.1']
    %8 = vsyncpa [#allocation3], 0
    // Predicated region
    $region2: #{lstm_module_forward.1} parent=1 // pred_check
      _
    $region3: #{lstm_module_forward.1} parent=1 // pred_check_branch
      %10 = sbr.rel (0) target = $region5
    $region4: #{lstm_module_forward.1} parent=1 // pred_region
      %12 = vsyncadd [#allocation3], 0
      %s13 = sshll.u32 %s0, 4
      %s14 = int_to_ptr.hbm [resolvable:$true] %s13
      %s15 = sshll.u32 [#allocation2], 4
      %s16 = int_to_ptr.vmem [resolvable:$true] %s15
      %21 = dma.hbm_to_vmem [thread:$0]  %s14, 896, %s16, [#allocation3], 64, 64, 4
    $region5: #{lstm_module_forward.1} parent=1 // pred_fallthru
      _
    // Predicated region
    $region6: #{lstm_module_forward.1} parent=1 // pred_check
      _
    $region7: #{lstm_module_forward.1} parent=1 // pred_check_branch
      %23 = sbr.rel (0) target = $region9
    $region8: #{lstm_module_forward.1} parent=1 // pred_region
      _
    $region9: #{lstm_module_forward.1} parent=1 // pred_fallthru
      _
    // Predicated region
    $region10: #{lstm_module_forward.1} parent=1 // pred_check
      _
    $region11: #{lstm_module_forward.1} parent=1 // pred_check_branch
      %25 = sbr.rel (0) target = $region13
    $region12: #{lstm_module_forward.1} parent=1 // pred_region
      _
    $region13: #{lstm_module_forward.1} parent=1 // pred_fallthru
      _
    // Predicated region
    $region14: #{lstm_module_forward.1} parent=1 // pred_check
      _
    $region15: #{lstm_module_forward.1} parent=1 // pred_check_branch
      %27 = sbr.rel (0) target = $region17
    $region16: #{lstm_module_forward.1} parent=1 // pred_region
      %29 = dma.done [#allocation3], 896
    $region17: #{lstm_module_forward.1} parent=1 // pred_fallthru
      _
    %v31 = vld [vmem:[%s1] sm:$0x1]
    %v32 = vld [vmem:[%s1 + $0x1] sm:$0x1]
    %v33 = vld [vmem:[#allocation2] sm:$0xf]
    %v34 = vld [vmem:[#allocation2 + $0x4] sm:$0xf]
    %v35 = vld [vmem:[#allocation2 + $0x8] sm:$0xf]
    %v36 = vld [vmem:[#allocation2 + $0xc] sm:$0xf]
    %v37 = vld [vmem:[#allocation2 + $0x10] sm:$0xf]
    %v38 = vld [vmem:[#allocation2 + $0x14] sm:$0xf]
    %v39 = vld [vmem:[#allocation2 + $0x18] sm:$0xf]
    %v40 = vld [vmem:[#allocation2 + $0x1c] sm:$0xf]
    %v41 = vld [vmem:[#allocation2 + $0x20] sm:$0xf]
    %v42 = vld [vmem:[#allocation2 + $0x24] sm:$0xf]
    %v43 = vld [vmem:[#allocation2 + $0x28] sm:$0xf]
    %v44 = vld [vmem:[#allocation2 + $0x2c] sm:$0xf]
    %v45 = vld [vmem:[#allocation2 + $0x30] sm:$0xf]
    %v46 = vld [vmem:[#allocation2 + $0x34] sm:$0xf]
    %v54 = vunpack.c.l.b16 %v33
    %v55 = vunpack.c.l.b16 %v34
    %v56 = vunpack.c.l.b16 %v35
    %v57 = vunpack.c.l.b16 %v36
    %v58 = vunpack.c.l.b16 %v37
    %v59 = vunpack.c.l.b16 %v38
    %v60 = vunpack.c.l.b16 %v39
    %v61 = vpack.c.b16 %v55, %v54
    %v62 = vpack.c.b16 %v57, %v56
    %v63 = vpack.c.b16 %v59, %v58
    %v64 = vpack.c.b16 %v60, %v60
    %vm68 = vcmask 457728
    %v70 = vsel %vm68, %v31, 0
    %vm72 = vcmask 1043456
    %v74 = vsel %vm72, %v64, 0
    %76 = vmatpush.bf16.msra.mxu0 0
    %77 = vmatpush.bf16.msra.mxu0 0
    %78 = vmatpush.bf16.msra.mxu0 0
    %79 = vmatpush.bf16.msra.mxu0 0
    %80 = vmatpush.bf16.msra.mxu0 %v74
    %81 = vmatpush.bf16.msra.mxu0 %v63
    %82 = vmatpush.bf16.msra.mxu0 %v62
    %83 = vmatpush.bf16.msra.mxu0 %v61
    %84 = vmatmul.bf16.gmra.mxu0 %v70
    %v85 = vpop.f32.mrf.mxu0
    %v86 = vadd.f32 0.0, %v85
    %v87 = vpop.f32.mrf.mxu0
    %88 = vdwg.mxu0
    %v96 = vunpack.c.l.b16 %v40
    %v97 = vunpack.c.l.b16 %v41
    %v98 = vunpack.c.l.b16 %v42
    %v99 = vunpack.c.l.b16 %v43
    %v100 = vunpack.c.l.b16 %v44
    %v101 = vunpack.c.l.b16 %v45
    %v102 = vunpack.c.l.b16 %v46
    %v103 = vpack.c.b16 %v97, %v96
    %v104 = vpack.c.b16 %v99, %v98
    %v105 = vpack.c.b16 %v101, %v100
    %v106 = vpack.c.b16 %v102, %v102
    %v111 = vsel %vm68, %v32, 0
    %v114 = vsel %vm72, %v106, 0
    %116 = vmatpush.bf16.msra.mxu0 0
    %117 = vmatpush.bf16.msra.mxu0 0
    %118 = vmatpush.bf16.msra.mxu0 0
    %119 = vmatpush.bf16.msra.mxu0 0
    %120 = vmatpush.bf16.msra.mxu0 %v114
    %121 = vmatpush.bf16.msra.mxu0 %v105
    %122 = vmatpush.bf16.msra.mxu0 %v104
    %123 = vmatpush.bf16.msra.mxu0 %v103
    %124 = vmatmul.bf16.gmra.mxu0 %v111
    %v125 = vpop.f32.mrf.mxu0
    %v126 = vadd.f32 0.0, %v125
    %v127 = vpop.f32.mrf.mxu0
    %128 = vdwg.mxu0
    %v129 = vlaneseq
    %v130 = vand.u32 %v129, 127
    %vm131 = vcmp.lt.s32.totalorder %v130, 96
    %v132 = vmul.f32 %v86, 0.5
    %v133 = vmul.f32 %v126, 0.5
    %v134 = vsel %vm131, %v132, %v86
    %v135 = vsel %vm131, %v133, %v126
    %v136 = vtanh.pop %v134
    %v137 = vtanh.pop %v135
    %v138 = vadd.f32 %v136, 1.0
    %v139 = vadd.f32 %v137, 1.0
    %v140 = vmul.f32 %v138, 0.5
    %v141 = vmul.f32 %v139, 0.5
    %v142 = vsel %vm131, %v140, %v136
    %v143 = vsel %vm131, %v141, %v137
    %v144 = vld [vmem:[%s2] sm:$0x1]
    %v145 = vld [vmem:[%s2 + $0x1] sm:$0x1]
    %v148 = vperm.slane %v144, 0
    %v149 = vperm.slane %v145, 0
    %150 = vrot.lane.b32.xlu0 %v148, 32
    %v151 = vpop.permute.xlu0 %150
    %152 = vrot.lane.b32.xlu0 %v149, 32
    %v153 = vpop.permute.xlu0 %152
    %v156 = vmul.f32 %v142, %v151
    %v157 = vmul.f32 %v143, %v153
    %160 = vrot.lane.b32.xlu0 %v142, 32
    %v161 = vpop.permute.xlu0 %160
    %162 = vrot.lane.b32.xlu0 %v143, 32
    %v163 = vpop.permute.xlu0 %162
    %v166 = vmul.f32 %v142, %v161
    %v167 = vmul.f32 %v143, %v163
    %170 = vrot.lane.b32.xlu0 %v166, 32
    %v171 = vpop.permute.xlu0 %170
    %172 = vrot.lane.b32.xlu0 %v167, 32
    %v173 = vpop.permute.xlu0 %172
    %v176 = vadd.f32 %v156, %v171
    %v177 = vadd.f32 %v157, %v173
    %v178 = vmax.f32 %v176, 0.0
    %v179 = vmax.f32 %v177, 0.0
    %182 = vrot.lane.b32.xlu0 %v178, 32
    %v183 = vpop.permute.xlu0 %182
    %184 = vrot.lane.b32.xlu0 %v179, 32
    %v185 = vpop.permute.xlu0 %184
    %v188 = vmul.f32 %v142, %v183
    %v189 = vmul.f32 %v143, %v185
    %190 = vst [vmem:[%s3] sm:$0xff] 0.0
    %191 = vst [vmem:[%s3 + $0x8] sm:$0xff] 0.0
    %194 = vrot.lane.b32.xlu0 %v188, 64
    %v195 = vpop.permute.xlu0 %194
    %196 = vrot.lane.b32.xlu0 %v189, 64
    %v197 = vpop.permute.xlu0 %196
    %vm200 = vcmask 253952
    %201 = vst.msk [vmem:[%s3] sm:$0x1] %vm200, %v195
    %202 = vst.msk [vmem:[%s3 + $0x8] sm:$0x1] %vm200, %v197
    %205 = vrot.lane.b32.xlu0 %v176, 96
    %v206 = vpop.permute.xlu0 %205
    %207 = vrot.lane.b32.xlu0 %v177, 96
    %v208 = vpop.permute.xlu0 %207
    %211 = vst.msk [vmem:[%s3 + $0x1] sm:$0x1] %vm200, %v206
    %212 = vst.msk [vmem:[%s3 + $0x9] sm:$0x1] %vm200, %v208
    %213 = vrot.lane.b32.xlu0 %v142, 64
    %v214 = vpop.permute.xlu0 %213
    %215 = vrot.lane.b32.xlu0 %v143, 64
    %v216 = vpop.permute.xlu0 %215
    %219 = vst.msk [vmem:[%s3 + $0x2] sm:$0x1] %vm200, %v214
    %220 = vst.msk [vmem:[%s3 + $0xa] sm:$0x1] %vm200, %v216
    %221 = vst.msk [vmem:[%s3 + $0x3] sm:$0x1] %vm200, %v142
    %222 = vst.msk [vmem:[%s3 + $0xb] sm:$0x1] %vm200, %v143
    %223 = vrot.lane.b32.xlu0 %v142, 96
    %v224 = vpop.permute.xlu0 %223
    %225 = vrot.lane.b32.xlu0 %v143, 96
    %v226 = vpop.permute.xlu0 %225
    %229 = vst.msk [vmem:[%s3 + $0x4] sm:$0x1] %vm200, %v224
    %230 = vst.msk [vmem:[%s3 + $0xc] sm:$0x1] %vm200, %v226
    %231 = vst.msk [vmem:[%s3 + $0x5] sm:$0x1] %vm200, %v161
    %232 = vst.msk [vmem:[%s3 + $0xd] sm:$0x1] %vm200, %v163
    // Predicated region
    $region18: #{lstm_module_forward.1} parent=1 // pred_check
      _
    $region19: #{lstm_module_forward.1} parent=1 // pred_check_branch
      %234 = sbr.rel (0) target = $region21
    $region20: #{lstm_module_forward.1} parent=1 // pred_region
      _
    $region21: #{lstm_module_forward.1} parent=1 // pred_fallthru
      _
    // Predicated region
    $region22: #{lstm_module_forward.1} parent=1 // pred_check
      _
    $region23: #{lstm_module_forward.1} parent=1 // pred_check_branch
      %236 = sbr.rel (0) target = $region25
    $region24: #{lstm_module_forward.1} parent=1 // pred_region
      _
    $region25: #{lstm_module_forward.1} parent=1 // pred_fallthru
      _
    %237 = vsyncpa [#allocation3], 1

</llo_original>
